<compile_context>
chip_gen: v7x
topology: tpu7x:2x2x1
jax: 0.10.0
libtpu: 0.0.40
codegen_flags: <defaults>
</compile_context>

<pallas_src>
import jax
import jax.numpy as jnp
from jax import lax
from jax.experimental import pallas as pl
from jax.experimental.pallas import tpu as pltpu

KSIZE = 7
PAD = KSIZE // 2


def _spatial_attention_kernel(w_ref, x_ref, o_ref, xpad_ref):
    # w_ref:    (7, 7)          f32 SMEM   conv weight (out_ch = in_ch = 1 squeezed away)
    # x_ref:    (Bt*P, H, W)    f32 VMEM   Bt groups x P lane-packed images (slot-major order)
    # o_ref:    (Bt, H, Lout)   f32 VMEM   packed output slab, Lout = P*(W+6)
    # xpad_ref: (Bt, Hp, Lpad)  f32 VMEM   zero-padded packed slab, Lpad = Lout + 6
    Bt, Hp, Lpad = xpad_ref.shape
    _, H, Lout = o_ref.shape
    W = x_ref.shape[2]
    P = x_ref.shape[0] // Bt
    Wp = W + 2 * PAD

    # ---- halo: zero only the border strips (top/bottom rows + guard lanes) ----------------
    def zeros(shape):
        return jnp.zeros(shape, jnp.float32)

    xpad_ref[:, :PAD, :] = zeros((Bt, PAD, Lpad))                  # top halo rows
    xpad_ref[:, PAD + H:, :] = zeros((Bt, Hp - PAD - H, Lpad))     # bottom halo rows
    gap_lo = [0] + [p * Wp + PAD + W for p in range(P)]
    gap_hi = [PAD] + [(p + 1) * Wp + PAD for p in range(P - 1)] + [Lpad]
    for lo, hi in zip(gap_lo, gap_hi):                             # left / inter-image / right guard lanes
        xpad_ref[:, PAD:PAD + H, lo:hi] = zeros((Bt, H, hi - lo))

    # ---- pack each image into its lane slot (slot-major batch layout) ----------------------
    for p in range(P):
        dst = p * Wp + PAD
        xpad_ref[:, PAD:PAD + H, dst:dst + W] = x_ref[p * Bt:(p + 1) * Bt, :, :]

    # ---- 7x7 conv: 7 lane-shifted column loads, 7 sublane slices, 49 VPU FMAs --------------
    cols = [xpad_ref[:, :, dw:dw + Lout] for dw in range(KSIZE)]   # each (Bt, Hp, Lout)
    acc = jnp.zeros((Bt, H, Lout), jnp.float32)
    for dh in range(KSIZE):
        row = cols[0] * w_ref[dh, 0]
        for dw in range(1, KSIZE):
            row = row + cols[dw] * w_ref[dh, dw]                   # full-Hp-height FMAs
        acc = acc + row[:, dh:dh + H, :]                           # single sublane slice per dh

    # sigmoid(x) = 0.5 * tanh(0.5 x) + 0.5  (single EUP transcendental, no approx error)
    o_ref[...] = (0.5 * jnp.tanh(0.5 * acc) + 0.5).astype(o_ref.dtype)


def _vmem_budget_bytes():
    """~5/8 of physical VMEM: ~40 MiB on v7x (64 MiB/TC), ~80 MiB on v5e/v6e (128 MiB)."""
    try:
        cap = int(pltpu.get_tpu_info().vmem_capacity_bytes)
    except Exception:
        cap = 64 * 1024 * 1024          # conservative fallback (v7x per-core VMEM)
    return (cap * 5) // 8


def _pick_group_tile(G, H, W, P, Lout, Lpad, budget_bytes):
    """Packed groups per grid step, sized against the real per-group VMEM footprint."""
    Hp = H + 2 * PAD
    per_group = 4 * (
        Hp * Lpad                       # padded scratch slab
        + 2 * P * H * W                 # double-buffered input block
        + 2 * H * Lout                  # double-buffered output block
        + (KSIZE + 1) * Hp * Lout       # 7 hoisted lane-shifted columns + row temp
        + 2 * H * Lout                  # acc + sigmoid temp
    )
    bt = max(1, (budget_bytes * 3 // 4) // per_group)   # 25% headroom for compiler scratch
    # Keep ~8 grid steps when the batch allows: >=4 steps per TC on 2-core v7x and a deep
    # software pipeline on single-core v5e/v6e (no unconditional halving of the tile).
    bt = min(bt, max(1, pl.cdiv(G, 8)))
    return int(min(bt, G))


def spatial_attention(x, weight):
    """x: (N, 1, H, W), weight: (1, 1, 7, 7)  ->  sigmoid(conv2d(x, w, padding=3)), (N, 1, H, W)."""
    N, C, H, W = x.shape
    assert C == 1, "SpatialAttention conv1 expects a single input channel"
    w2d = weight.reshape(KSIZE, KSIZE).astype(jnp.float32)
    x_sq = x.reshape(N, H, W).astype(jnp.float32)           # metadata-only reshape

    Hp, Wp = H + 2 * PAD, W + 2 * PAD
    # Lane-packing factor: enough (W+6)-lane slots to cross one 128-lane vreg (1 for big W).
    P = 1 if Wp >= 128 else max(1, min(N, pl.cdiv(128, Wp)))
    Lout = P * Wp                    # packed output width; image p lives at lanes [p*Wp, p*Wp+W)
    Lpad = Lout + 2 * PAD            # padded input slab width

    budget = _vmem_budget_bytes()
    G = pl.cdiv(N, P)                # number of packed groups
    bt = _pick_group_tile(G, H, W, P, Lout, Lpad, budget)
    steps = pl.cdiv(G, bt)
    Gtot = steps * bt
    Np = Gtot * P                    # batch padded to a whole number of grid blocks
    if Np > N:
        x_sq = jnp.pad(x_sq, ((0, Np - N), (0, 0), (0, 0)))

    out_slab = pl.pallas_call(
        _spatial_attention_kernel,
        out_shape=jax.ShapeDtypeStruct((Gtot, H, Lout), jnp.float32),
        grid=(steps,),
        in_specs=[
            # Full 7x7 weight lives in SMEM; scalar reads w_ref[dh, dw] are cheap.
            pl.BlockSpec(memory_space=pltpu.SMEM),
            # bt*P unpadded images per grid step; last two block dims equal the array dims.
            pl.BlockSpec((bt * P, H, W), lambda n: (n, 0, 0)),
        ],
        # Lane-dense packed output slab (last two block dims equal the array dims).
        out_specs=pl.BlockSpec((bt, H, Lout), lambda n: (n, 0, 0)),
        scratch_shapes=[pltpu.VMEM((bt, Hp, Lpad), jnp.float32)],
        compiler_params=pltpu.CompilerParams(
            dimension_semantics=("parallel",),
            vmem_limit_bytes=int(budget),
        ),
        cost_estimate=pl.CostEstimate(
            flops=2 * KSIZE * KSIZE * Np * H * W,
            transcendentals=Np * H * W,
            bytes_accessed=4 * (Np * H * W + Gtot * H * Lout),
        ),
    )(w2d, x_sq)

    # Unpack the lane-packed slab: step n, group g, slot p holds image n*bt*P + p*bt + g.
    y = out_slab.reshape(steps, bt, H, P, Wp)[:, :, :, :, :W]   # (n, g, h, p, w)
    y = jnp.transpose(y, (0, 3, 1, 2, 4)).reshape(Gtot * P, H, W)
    return y[:N].reshape(N, 1, H, W).astype(x.dtype)


def _reference(x, weight):
    # Plain-JAX reference: NCHW conv with explicit (3,3) padding, then sigmoid.
    y = lax.conv_general_dilated(
        x.astype(jnp.float32), weight.astype(jnp.float32),
        window_strides=(1, 1), padding=[(PAD, PAD), (PAD, PAD)],
        dimension_numbers=("NCHW", "OIHW", "NCHW"),
        precision=lax.Precision.HIGHEST)
    return jax.nn.sigmoid(y)


if __name__ == "__main__":
    key = jax.random.PRNGKey(0)
    kx, kw = jax.random.split(key)

    N, C, H, W = 2, 1, 16, 16
    x = jax.random.normal(kx, (N, C, H, W), dtype=jnp.float32)
    # Deterministic synthetic conv weight (shape (out=1, in=1, 7, 7), bias=False).
    weight = jax.random.normal(kw, (1, 1, KSIZE, KSIZE), dtype=jnp.float32) * 0.1

    y = spatial_attention(x, weight)
    jax.block_until_ready(y)

    y_ref = _reference(x, weight)
    assert y.shape == (N, C, H, W)
    assert jnp.allclose(y, y_ref, atol=1e-4, rtol=1e-4), "mismatch vs reference conv+sigmoid"

    print("KERNEL_OK")
</pallas_src>

<mosaic_0001>
module attributes {stable_mosaic.version = 11 : i64} {
  func.func @_spatial_attention_kernel(%arg0: i32, %arg1: memref<7x7xf32, #tpu.memory_space<smem>>, %arg2: memref<2x16x16xf32, #tpu.memory_space<vmem>>, %arg3: memref<1x16x44xf32, #tpu.memory_space<vmem>>, %arg4: memref<1x22x50xf32, #tpu.memory_space<vmem>>) attributes {dimension_semantics = [#tpu.dimension_semantics<parallel>], iteration_bounds = array<i64: 1>, scalar_prefetch = 0 : i64, scratch_operands = 1 : i64, tpu.core_type = #tpu.core_type<tc>, window_params = [{transform_indices = @transform_0, window_bounds = array<i64: 7, 7>}, {transform_indices = @transform_1, window_bounds = array<i64: 2, 16, 16>}, {transform_indices = @transform_2, window_bounds = array<i64: 1, 16, 44>}]} {
    %cst = arith.constant 0.000000e+00 : f32
    %0 = vector.broadcast %cst : f32 to vector<1x3x50xf32>
    %c0 = arith.constant 0 : index
    %c0_0 = arith.constant 0 : index
    %c0_1 = arith.constant 0 : index
    %1 = vector.load %arg4[%c0, %c0_0, %c0_1] : memref<1x22x50xf32, #tpu.memory_space<vmem>>, vector<1x3x50xf32>
    tpu.vector_store %arg4[%c0, %c0_0, %c0_1], %0 {strides = array<i32>} : memref<1x22x50xf32, #tpu.memory_space<vmem>>, vector<1x3x50xf32>,
    %cst_2 = arith.constant 0.000000e+00 : f32
    %2 = vector.broadcast %cst_2 : f32 to vector<1x3x50xf32>
    %c0_3 = arith.constant 0 : index
    %c19 = arith.constant 19 : index
    %c0_4 = arith.constant 0 : index
    %3 = vector.load %arg4[%c0_3, %c19, %c0_4] : memref<1x22x50xf32, #tpu.memory_space<vmem>>, vector<1x3x50xf32>
    tpu.vector_store %arg4[%c0_3, %c19, %c0_4], %2 {strides = array<i32>} : memref<1x22x50xf32, #tpu.memory_space<vmem>>, vector<1x3x50xf32>,
    %cst_5 = arith.constant 0.000000e+00 : f32
    %4 = vector.broadcast %cst_5 : f32 to vector<1x16x3xf32>
    %c0_6 = arith.constant 0 : index
    %c3 = arith.constant 3 : index
    %c0_7 = arith.constant 0 : index
    %5 = vector.load %arg4[%c0_6, %c3, %c0_7] : memref<1x22x50xf32, #tpu.memory_space<vmem>>, vector<1x16x3xf32>
    tpu.vector_store %arg4[%c0_6, %c3, %c0_7], %4 {strides = array<i32>} : memref<1x22x50xf32, #tpu.memory_space<vmem>>, vector<1x16x3xf32>,
    %cst_8 = arith.constant 0.000000e+00 : f32
    %6 = vector.broadcast %cst_8 : f32 to vector<1x16x6xf32>
    %c0_9 = arith.constant 0 : index
    %c3_10 = arith.constant 3 : index
    %c19_11 = arith.constant 19 : index
    %7 = vector.load %arg4[%c0_9, %c3_10, %c19_11] : memref<1x22x50xf32, #tpu.memory_space<vmem>>, vector<1x16x6xf32>
    tpu.vector_store %arg4[%c0_9, %c3_10, %c19_11], %6 {strides = array<i32>} : memref<1x22x50xf32, #tpu.memory_space<vmem>>, vector<1x16x6xf32>,
    %cst_12 = arith.constant 0.000000e+00 : f32
    %8 = vector.broadcast %cst_12 : f32 to vector<1x16x9xf32>
    %c0_13 = arith.constant 0 : index
    %c3_14 = arith.constant 3 : index
    %c41 = arith.constant 41 : index
    %9 = vector.load %arg4[%c0_13, %c3_14, %c41] : memref<1x22x50xf32, #tpu.memory_space<vmem>>, vector<1x16x9xf32>
    tpu.vector_store %arg4[%c0_13, %c3_14, %c41], %8 {strides = array<i32>} : memref<1x22x50xf32, #tpu.memory_space<vmem>>, vector<1x16x9xf32>,
    %c0_15 = arith.constant 0 : index
    %c0_16 = arith.constant 0 : index
    %c0_17 = arith.constant 0 : index
    %10 = vector.load %arg2[%c0_15, %c0_16, %c0_17] : memref<2x16x16xf32, #tpu.memory_space<vmem>>, vector<1x16x16xf32>
    %c0_18 = arith.constant 0 : index
    %c3_19 = arith.constant 3 : index
    %c3_20 = arith.constant 3 : index
    %11 = vector.load %arg4[%c0_18, %c3_19, %c3_20] : memref<1x22x50xf32, #tpu.memory_space<vmem>>, vector<1x16x16xf32>
    tpu.vector_store %arg4[%c0_18, %c3_19, %c3_20], %10 {strides = array<i32>} : memref<1x22x50xf32, #tpu.memory_space<vmem>>, vector<1x16x16xf32>,
    %c1 = arith.constant 1 : index
    %c0_21 = arith.constant 0 : index
    %c0_22 = arith.constant 0 : index
    %12 = vector.load %arg2[%c1, %c0_21, %c0_22] : memref<2x16x16xf32, #tpu.memory_space<vmem>>, vector<1x16x16xf32>
    %c0_23 = arith.constant 0 : index
    %c3_24 = arith.constant 3 : index
    %c25 = arith.constant 25 : index
    %13 = vector.load %arg4[%c0_23, %c3_24, %c25] : memref<1x22x50xf32, #tpu.memory_space<vmem>>, vector<1x16x16xf32>
    tpu.vector_store %arg4[%c0_23, %c3_24, %c25], %12 {strides = array<i32>} : memref<1x22x50xf32, #tpu.memory_space<vmem>>, vector<1x16x16xf32>,
    %c0_25 = arith.constant 0 : index
    %c0_26 = arith.constant 0 : index
    %c0_27 = arith.constant 0 : index
    %14 = vector.load %arg4[%c0_25, %c0_26, %c0_27] : memref<1x22x50xf32, #tpu.memory_space<vmem>>, vector<1x22x44xf32>
    %c0_28 = arith.constant 0 : index
    %c0_29 = arith.constant 0 : index
    %c1_30 = arith.constant 1 : index
    %15 = vector.load %arg4[%c0_28, %c0_29, %c1_30] : memref<1x22x50xf32, #tpu.memory_space<vmem>>, vector<1x22x44xf32>
    %c0_31 = arith.constant 0 : index
    %c0_32 = arith.constant 0 : index
    %c2 = arith.constant 2 : index
    %16 = vector.load %arg4[%c0_31, %c0_32, %c2] : memref<1x22x50xf32, #tpu.memory_space<vmem>>, vector<1x22x44xf32>
    %c0_33 = arith.constant 0 : index
    %c0_34 = arith.constant 0 : index
    %c3_35 = arith.constant 3 : index
    %17 = vector.load %arg4[%c0_33, %c0_34, %c3_35] : memref<1x22x50xf32, #tpu.memory_space<vmem>>, vector<1x22x44xf32>
    %c0_36 = arith.constant 0 : index
    %c0_37 = arith.constant 0 : index
    %c4 = arith.constant 4 : index
    %18 = vector.load %arg4[%c0_36, %c0_37, %c4] : memref<1x22x50xf32, #tpu.memory_space<vmem>>, vector<1x22x44xf32>
    %c0_38 = arith.constant 0 : index
    %c0_39 = arith.constant 0 : index
    %c5 = arith.constant 5 : index
    %19 = vector.load %arg4[%c0_38, %c0_39, %c5] : memref<1x22x50xf32, #tpu.memory_space<vmem>>, vector<1x22x44xf32>
    %c0_40 = arith.constant 0 : index
    %c0_41 = arith.constant 0 : index
    %c6 = arith.constant 6 : index
    %20 = vector.load %arg4[%c0_40, %c0_41, %c6] : memref<1x22x50xf32, #tpu.memory_space<vmem>>, vector<1x22x44xf32>
    %cst_42 = arith.constant 0.000000e+00 : f32
    %21 = vector.broadcast %cst_42 : f32 to vector<1x16x44xf32>
    %c0_43 = arith.constant 0 : index
    %c0_44 = arith.constant 0 : index
    %22 = memref.load %arg1[%c0_43, %c0_44] : memref<7x7xf32, #tpu.memory_space<smem>>
    %23 = vector.broadcast %22 : f32 to vector<1x22x44xf32>
    %24 = arith.mulf %14, %23 : vector<1x22x44xf32>
    %c0_45 = arith.constant 0 : index
    %c1_46 = arith.constant 1 : index
    %25 = memref.load %arg1[%c0_45, %c1_46] : memref<7x7xf32, #tpu.memory_space<smem>>
    %26 = vector.broadcast %25 : f32 to vector<1x22x44xf32>
    %27 = arith.mulf %15, %26 : vector<1x22x44xf32>
    %28 = arith.addf %24, %27 : vector<1x22x44xf32>
    %c0_47 = arith.constant 0 : index
    %c2_48 = arith.constant 2 : index
    %29 = memref.load %arg1[%c0_47, %c2_48] : memref<7x7xf32, #tpu.memory_space<smem>>
    %30 = vector.broadcast %29 : f32 to vector<1x22x44xf32>
    %31 = arith.mulf %16, %30 : vector<1x22x44xf32>
    %32 = arith.addf %28, %31 : vector<1x22x44xf32>
    %c0_49 = arith.constant 0 : index
    %c3_50 = arith.constant 3 : index
    %33 = memref.load %arg1[%c0_49, %c3_50] : memref<7x7xf32, #tpu.memory_space<smem>>
    %34 = vector.broadcast %33 : f32 to vector<1x22x44xf32>
    %35 = arith.mulf %17, %34 : vector<1x22x44xf32>
    %36 = arith.addf %32, %35 : vector<1x22x44xf32>
    %c0_51 = arith.constant 0 : index
    %c4_52 = arith.constant 4 : index
    %37 = memref.load %arg1[%c0_51, %c4_52] : memref<7x7xf32, #tpu.memory_space<smem>>
    %38 = vector.broadcast %37 : f32 to vector<1x22x44xf32>
    %39 = arith.mulf %18, %38 : vector<1x22x44xf32>
    %40 = arith.addf %36, %39 : vector<1x22x44xf32>
    %c0_53 = arith.constant 0 : index
    %c5_54 = arith.constant 5 : index
    %41 = memref.load %arg1[%c0_53, %c5_54] : memref<7x7xf32, #tpu.memory_space<smem>>
    %42 = vector.broadcast %41 : f32 to vector<1x22x44xf32>
    %43 = arith.mulf %19, %42 : vector<1x22x44xf32>
    %44 = arith.addf %40, %43 : vector<1x22x44xf32>
    %c0_55 = arith.constant 0 : index
    %c6_56 = arith.constant 6 : index
    %45 = memref.load %arg1[%c0_55, %c6_56] : memref<7x7xf32, #tpu.memory_space<smem>>
    %46 = vector.broadcast %45 : f32 to vector<1x22x44xf32>
    %47 = arith.mulf %20, %46 : vector<1x22x44xf32>
    %48 = arith.addf %44, %47 : vector<1x22x44xf32>
    %49 = vector.extract_strided_slice %48 {offsets = [0, 0, 0], sizes = [1, 16, 44], strides = [1, 1, 1]} : vector<1x22x44xf32> to vector<1x16x44xf32>
    %50 = arith.addf %21, %49 : vector<1x16x44xf32>
    %c1_57 = arith.constant 1 : index
    %c0_58 = arith.constant 0 : index
    %51 = memref.load %arg1[%c1_57, %c0_58] : memref<7x7xf32, #tpu.memory_space<smem>>
    %52 = vector.broadcast %51 : f32 to vector<1x22x44xf32>
    %53 = arith.mulf %14, %52 : vector<1x22x44xf32>
    %c1_59 = arith.constant 1 : index
    %c1_60 = arith.constant 1 : index
    %54 = memref.load %arg1[%c1_59, %c1_60] : memref<7x7xf32, #tpu.memory_space<smem>>
    %55 = vector.broadcast %54 : f32 to vector<1x22x44xf32>
    %56 = arith.mulf %15, %55 : vector<1x22x44xf32>
    %57 = arith.addf %53, %56 : vector<1x22x44xf32>
    %c1_61 = arith.constant 1 : index
    %c2_62 = arith.constant 2 : index
    %58 = memref.load %arg1[%c1_61, %c2_62] : memref<7x7xf32, #tpu.memory_space<smem>>
    %59 = vector.broadcast %58 : f32 to vector<1x22x44xf32>
    %60 = arith.mulf %16, %59 : vector<1x22x44xf32>
    %61 = arith.addf %57, %60 : vector<1x22x44xf32>
    %c1_63 = arith.constant 1 : index
    %c3_64 = arith.constant 3 : index
    %62 = memref.load %arg1[%c1_63, %c3_64] : memref<7x7xf32, #tpu.memory_space<smem>>
    %63 = vector.broadcast %62 : f32 to vector<1x22x44xf32>
    %64 = arith.mulf %17, %63 : vector<1x22x44xf32>
    %65 = arith.addf %61, %64 : vector<1x22x44xf32>
    %c1_65 = arith.constant 1 : index
    %c4_66 = arith.constant 4 : index
    %66 = memref.load %arg1[%c1_65, %c4_66] : memref<7x7xf32, #tpu.memory_space<smem>>
    %67 = vector.broadcast %66 : f32 to vector<1x22x44xf32>
    %68 = arith.mulf %18, %67 : vector<1x22x44xf32>
    %69 = arith.addf %65, %68 : vector<1x22x44xf32>
    %c1_67 = arith.constant 1 : index
    %c5_68 = arith.constant 5 : index
    %70 = memref.load %arg1[%c1_67, %c5_68] : memref<7x7xf32, #tpu.memory_space<smem>>
    %71 = vector.broadcast %70 : f32 to vector<1x22x44xf32>
    %72 = arith.mulf %19, %71 : vector<1x22x44xf32>
    %73 = arith.addf %69, %72 : vector<1x22x44xf32>
    %c1_69 = arith.constant 1 : index
    %c6_70 = arith.constant 6 : index
    %74 = memref.load %arg1[%c1_69, %c6_70] : memref<7x7xf32, #tpu.memory_space<smem>>
    %75 = vector.broadcast %74 : f32 to vector<1x22x44xf32>
    %76 = arith.mulf %20, %75 : vector<1x22x44xf32>
    %77 = arith.addf %73, %76 : vector<1x22x44xf32>
    %78 = vector.extract_strided_slice %77 {offsets = [0, 1, 0], sizes = [1, 16, 44], strides = [1, 1, 1]} : vector<1x22x44xf32> to vector<1x16x44xf32>
    %79 = arith.addf %50, %78 : vector<1x16x44xf32>
    %c2_71 = arith.constant 2 : index
    %c0_72 = arith.constant 0 : index
    %80 = memref.load %arg1[%c2_71, %c0_72] : memref<7x7xf32, #tpu.memory_space<smem>>
    %81 = vector.broadcast %80 : f32 to vector<1x22x44xf32>
    %82 = arith.mulf %14, %81 : vector<1x22x44xf32>
    %c2_73 = arith.constant 2 : index
    %c1_74 = arith.constant 1 : index
    %83 = memref.load %arg1[%c2_73, %c1_74] : memref<7x7xf32, #tpu.memory_space<smem>>
    %84 = vector.broadcast %83 : f32 to vector<1x22x44xf32>
    %85 = arith.mulf %15, %84 : vector<1x22x44xf32>
    %86 = arith.addf %82, %85 : vector<1x22x44xf32>
    %c2_75 = arith.constant 2 : index
    %c2_76 = arith.constant 2 : index
    %87 = memref.load %arg1[%c2_75, %c2_76] : memref<7x7xf32, #tpu.memory_space<smem>>
    %88 = vector.broadcast %87 : f32 to vector<1x22x44xf32>
    %89 = arith.mulf %16, %88 : vector<1x22x44xf32>
    %90 = arith.addf %86, %89 : vector<1x22x44xf32>
    %c2_77 = arith.constant 2 : index
    %c3_78 = arith.constant 3 : index
    %91 = memref.load %arg1[%c2_77, %c3_78] : memref<7x7xf32, #tpu.memory_space<smem>>
    %92 = vector.broadcast %91 : f32 to vector<1x22x44xf32>
    %93 = arith.mulf %17, %92 : vector<1x22x44xf32>
    %94 = arith.addf %90, %93 : vector<1x22x44xf32>
    %c2_79 = arith.constant 2 : index
    %c4_80 = arith.constant 4 : index
    %95 = memref.load %arg1[%c2_79, %c4_80] : memref<7x7xf32, #tpu.memory_space<smem>>
    %96 = vector.broadcast %95 : f32 to vector<1x22x44xf32>
    %97 = arith.mulf %18, %96 : vector<1x22x44xf32>
    %98 = arith.addf %94, %97 : vector<1x22x44xf32>
    %c2_81 = arith.constant 2 : index
    %c5_82 = arith.constant 5 : index
    %99 = memref.load %arg1[%c2_81, %c5_82] : memref<7x7xf32, #tpu.memory_space<smem>>
    %100 = vector.broadcast %99 : f32 to vector<1x22x44xf32>
    %101 = arith.mulf %19, %100 : vector<1x22x44xf32>
    %102 = arith.addf %98, %101 : vector<1x22x44xf32>
    %c2_83 = arith.constant 2 : index
    %c6_84 = arith.constant 6 : index
    %103 = memref.load %arg1[%c2_83, %c6_84] : memref<7x7xf32, #tpu.memory_space<smem>>
    %104 = vector.broadcast %103 : f32 to vector<1x22x44xf32>
    %105 = arith.mulf %20, %104 : vector<1x22x44xf32>
    %106 = arith.addf %102, %105 : vector<1x22x44xf32>
    %107 = vector.extract_strided_slice %106 {offsets = [0, 2, 0], sizes = [1, 16, 44], strides = [1, 1, 1]} : vector<1x22x44xf32> to vector<1x16x44xf32>
    %108 = arith.addf %79, %107 : vector<1x16x44xf32>
    %c3_85 = arith.constant 3 : index
    %c0_86 = arith.constant 0 : index
    %109 = memref.load %arg1[%c3_85, %c0_86] : memref<7x7xf32, #tpu.memory_space<smem>>
    %110 = vector.broadcast %109 : f32 to vector<1x22x44xf32>
    %111 = arith.mulf %14, %110 : vector<1x22x44xf32>
    %c3_87 = arith.constant 3 : index
    %c1_88 = arith.constant 1 : index
    %112 = memref.load %arg1[%c3_87, %c1_88] : memref<7x7xf32, #tpu.memory_space<smem>>
    %113 = vector.broadcast %112 : f32 to vector<1x22x44xf32>
    %114 = arith.mulf %15, %113 : vector<1x22x44xf32>
    %115 = arith.addf %111, %114 : vector<1x22x44xf32>
    %c3_89 = arith.constant 3 : index
    %c2_90 = arith.constant 2 : index
    %116 = memref.load %arg1[%c3_89, %c2_90] : memref<7x7xf32, #tpu.memory_space<smem>>
    %117 = vector.broadcast %116 : f32 to vector<1x22x44xf32>
    %118 = arith.mulf %16, %117 : vector<1x22x44xf32>
    %119 = arith.addf %115, %118 : vector<1x22x44xf32>
    %c3_91 = arith.constant 3 : index
    %c3_92 = arith.constant 3 : index
    %120 = memref.load %arg1[%c3_91, %c3_92] : memref<7x7xf32, #tpu.memory_space<smem>>
    %121 = vector.broadcast %120 : f32 to vector<1x22x44xf32>
    %122 = arith.mulf %17, %121 : vector<1x22x44xf32>
    %123 = arith.addf %119, %122 : vector<1x22x44xf32>
    %c3_93 = arith.constant 3 : index
    %c4_94 = arith.constant 4 : index
    %124 = memref.load %arg1[%c3_93, %c4_94] : memref<7x7xf32, #tpu.memory_space<smem>>
    %125 = vector.broadcast %124 : f32 to vector<1x22x44xf32>
    %126 = arith.mulf %18, %125 : vector<1x22x44xf32>
    %127 = arith.addf %123, %126 : vector<1x22x44xf32>
    %c3_95 = arith.constant 3 : index
    %c5_96 = arith.constant 5 : index
    %128 = memref.load %arg1[%c3_95, %c5_96] : memref<7x7xf32, #tpu.memory_space<smem>>
    %129 = vector.broadcast %128 : f32 to vector<1x22x44xf32>
    %130 = arith.mulf %19, %129 : vector<1x22x44xf32>
    %131 = arith.addf %127, %130 : vector<1x22x44xf32>
    %c3_97 = arith.constant 3 : index
    %c6_98 = arith.constant 6 : index
    %132 = memref.load %arg1[%c3_97, %c6_98] : memref<7x7xf32, #tpu.memory_space<smem>>
    %133 = vector.broadcast %132 : f32 to vector<1x22x44xf32>
    %134 = arith.mulf %20, %133 : vector<1x22x44xf32>
    %135 = arith.addf %131, %134 : vector<1x22x44xf32>
    %136 = vector.extract_strided_slice %135 {offsets = [0, 3, 0], sizes = [1, 16, 44], strides = [1, 1, 1]} : vector<1x22x44xf32> to vector<1x16x44xf32>
    %137 = arith.addf %108, %136 : vector<1x16x44xf32>
    %c4_99 = arith.constant 4 : index
    %c0_100 = arith.constant 0 : index
    %138 = memref.load %arg1[%c4_99, %c0_100] : memref<7x7xf32, #tpu.memory_space<smem>>
    %139 = vector.broadcast %138 : f32 to vector<1x22x44xf32>
    %140 = arith.mulf %14, %139 : vector<1x22x44xf32>
    %c4_101 = arith.constant 4 : index
    %c1_102 = arith.constant 1 : index
    %141 = memref.load %arg1[%c4_101, %c1_102] : memref<7x7xf32, #tpu.memory_space<smem>>
    %142 = vector.broadcast %141 : f32 to vector<1x22x44xf32>
    %143 = arith.mulf %15, %142 : vector<1x22x44xf32>
    %144 = arith.addf %140, %143 : vector<1x22x44xf32>
    %c4_103 = arith.constant 4 : index
    %c2_104 = arith.constant 2 : index
    %145 = memref.load %arg1[%c4_103, %c2_104] : memref<7x7xf32, #tpu.memory_space<smem>>
    %146 = vector.broadcast %145 : f32 to vector<1x22x44xf32>
    %147 = arith.mulf %16, %146 : vector<1x22x44xf32>
    %148 = arith.addf %144, %147 : vector<1x22x44xf32>
    %c4_105 = arith.constant 4 : index
    %c3_106 = arith.constant 3 : index
    %149 = memref.load %arg1[%c4_105, %c3_106] : memref<7x7xf32, #tpu.memory_space<smem>>
    %150 = vector.broadcast %149 : f32 to vector<1x22x44xf32>
    %151 = arith.mulf %17, %150 : vector<1x22x44xf32>
    %152 = arith.addf %148, %151 : vector<1x22x44xf32>
    %c4_107 = arith.constant 4 : index
    %c4_108 = arith.constant 4 : index
    %153 = memref.load %arg1[%c4_107, %c4_108] : memref<7x7xf32, #tpu.memory_space<smem>>
    %154 = vector.broadcast %153 : f32 to vector<1x22x44xf32>
    %155 = arith.mulf %18, %154 : vector<1x22x44xf32>
    %156 = arith.addf %152, %155 : vector<1x22x44xf32>
    %c4_109 = arith.constant 4 : index
    %c5_110 = arith.constant 5 : index
    %157 = memref.load %arg1[%c4_109, %c5_110] : memref<7x7xf32, #tpu.memory_space<smem>>
    %158 = vector.broadcast %157 : f32 to vector<1x22x44xf32>
    %159 = arith.mulf %19, %158 : vector<1x22x44xf32>
    %160 = arith.addf %156, %159 : vector<1x22x44xf32>
    %c4_111 = arith.constant 4 : index
    %c6_112 = arith.constant 6 : index
    %161 = memref.load %arg1[%c4_111, %c6_112] : memref<7x7xf32, #tpu.memory_space<smem>>
    %162 = vector.broadcast %161 : f32 to vector<1x22x44xf32>
    %163 = arith.mulf %20, %162 : vector<1x22x44xf32>
    %164 = arith.addf %160, %163 : vector<1x22x44xf32>
    %165 = vector.extract_strided_slice %164 {offsets = [0, 4, 0], sizes = [1, 16, 44], strides = [1, 1, 1]} : vector<1x22x44xf32> to vector<1x16x44xf32>
    %166 = arith.addf %137, %165 : vector<1x16x44xf32>
    %c5_113 = arith.constant 5 : index
    %c0_114 = arith.constant 0 : index
    %167 = memref.load %arg1[%c5_113, %c0_114] : memref<7x7xf32, #tpu.memory_space<smem>>
    %168 = vector.broadcast %167 : f32 to vector<1x22x44xf32>
    %169 = arith.mulf %14, %168 : vector<1x22x44xf32>
    %c5_115 = arith.constant 5 : index
    %c1_116 = arith.constant 1 : index
    %170 = memref.load %arg1[%c5_115, %c1_116] : memref<7x7xf32, #tpu.memory_space<smem>>
    %171 = vector.broadcast %170 : f32 to vector<1x22x44xf32>
    %172 = arith.mulf %15, %171 : vector<1x22x44xf32>
    %173 = arith.addf %169, %172 : vector<1x22x44xf32>
    %c5_117 = arith.constant 5 : index
    %c2_118 = arith.constant 2 : index
    %174 = memref.load %arg1[%c5_117, %c2_118] : memref<7x7xf32, #tpu.memory_space<smem>>
    %175 = vector.broadcast %174 : f32 to vector<1x22x44xf32>
    %176 = arith.mulf %16, %175 : vector<1x22x44xf32>
    %177 = arith.addf %173, %176 : vector<1x22x44xf32>
    %c5_119 = arith.constant 5 : index
    %c3_120 = arith.constant 3 : index
    %178 = memref.load %arg1[%c5_119, %c3_120] : memref<7x7xf32, #tpu.memory_space<smem>>
    %179 = vector.broadcast %178 : f32 to vector<1x22x44xf32>
    %180 = arith.mulf %17, %179 : vector<1x22x44xf32>
    %181 = arith.addf %177, %180 : vector<1x22x44xf32>
    %c5_121 = arith.constant 5 : index
    %c4_122 = arith.constant 4 : index
    %182 = memref.load %arg1[%c5_121, %c4_122] : memref<7x7xf32, #tpu.memory_space<smem>>
    %183 = vector.broadcast %182 : f32 to vector<1x22x44xf32>
    %184 = arith.mulf %18, %183 : vector<1x22x44xf32>
    %185 = arith.addf %181, %184 : vector<1x22x44xf32>
    %c5_123 = arith.constant 5 : index
    %c5_124 = arith.constant 5 : index
    %186 = memref.load %arg1[%c5_123, %c5_124] : memref<7x7xf32, #tpu.memory_space<smem>>
    %187 = vector.broadcast %186 : f32 to vector<1x22x44xf32>
    %188 = arith.mulf %19, %187 : vector<1x22x44xf32>
    %189 = arith.addf %185, %188 : vector<1x22x44xf32>
    %c5_125 = arith.constant 5 : index
    %c6_126 = arith.constant 6 : index
    %190 = memref.load %arg1[%c5_125, %c6_126] : memref<7x7xf32, #tpu.memory_space<smem>>
    %191 = vector.broadcast %190 : f32 to vector<1x22x44xf32>
    %192 = arith.mulf %20, %191 : vector<1x22x44xf32>
    %193 = arith.addf %189, %192 : vector<1x22x44xf32>
    %194 = vector.extract_strided_slice %193 {offsets = [0, 5, 0], sizes = [1, 16, 44], strides = [1, 1, 1]} : vector<1x22x44xf32> to vector<1x16x44xf32>
    %195 = arith.addf %166, %194 : vector<1x16x44xf32>
    %c6_127 = arith.constant 6 : index
    %c0_128 = arith.constant 0 : index
    %196 = memref.load %arg1[%c6_127, %c0_128] : memref<7x7xf32, #tpu.memory_space<smem>>
    %197 = vector.broadcast %196 : f32 to vector<1x22x44xf32>
    %198 = arith.mulf %14, %197 : vector<1x22x44xf32>
    %c6_129 = arith.constant 6 : index
    %c1_130 = arith.constant 1 : index
    %199 = memref.load %arg1[%c6_129, %c1_130] : memref<7x7xf32, #tpu.memory_space<smem>>
    %200 = vector.broadcast %199 : f32 to vector<1x22x44xf32>
    %201 = arith.mulf %15, %200 : vector<1x22x44xf32>
    %202 = arith.addf %198, %201 : vector<1x22x44xf32>
    %c6_131 = arith.constant 6 : index
    %c2_132 = arith.constant 2 : index
    %203 = memref.load %arg1[%c6_131, %c2_132] : memref<7x7xf32, #tpu.memory_space<smem>>
    %204 = vector.broadcast %203 : f32 to vector<1x22x44xf32>
    %205 = arith.mulf %16, %204 : vector<1x22x44xf32>
    %206 = arith.addf %202, %205 : vector<1x22x44xf32>
    %c6_133 = arith.constant 6 : index
    %c3_134 = arith.constant 3 : index
    %207 = memref.load %arg1[%c6_133, %c3_134] : memref<7x7xf32, #tpu.memory_space<smem>>
    %208 = vector.broadcast %207 : f32 to vector<1x22x44xf32>
    %209 = arith.mulf %17, %208 : vector<1x22x44xf32>
    %210 = arith.addf %206, %209 : vector<1x22x44xf32>
    %c6_135 = arith.constant 6 : index
    %c4_136 = arith.constant 4 : index
    %211 = memref.load %arg1[%c6_135, %c4_136] : memref<7x7xf32, #tpu.memory_space<smem>>
    %212 = vector.broadcast %211 : f32 to vector<1x22x44xf32>
    %213 = arith.mulf %18, %212 : vector<1x22x44xf32>
    %214 = arith.addf %210, %213 : vector<1x22x44xf32>
    %c6_137 = arith.constant 6 : index
    %c5_138 = arith.constant 5 : index
    %215 = memref.load %arg1[%c6_137, %c5_138] : memref<7x7xf32, #tpu.memory_space<smem>>
    %216 = vector.broadcast %215 : f32 to vector<1x22x44xf32>
    %217 = arith.mulf %19, %216 : vector<1x22x44xf32>
    %218 = arith.addf %214, %217 : vector<1x22x44xf32>
    %c6_139 = arith.constant 6 : index
    %c6_140 = arith.constant 6 : index
    %219 = memref.load %arg1[%c6_139, %c6_140] : memref<7x7xf32, #tpu.memory_space<smem>>
    %220 = vector.broadcast %219 : f32 to vector<1x22x44xf32>
    %221 = arith.mulf %20, %220 : vector<1x22x44xf32>
    %222 = arith.addf %218, %221 : vector<1x22x44xf32>
    %223 = vector.extract_strided_slice %222 {offsets = [0, 6, 0], sizes = [1, 16, 44], strides = [1, 1, 1]} : vector<1x22x44xf32> to vector<1x16x44xf32>
    %224 = arith.addf %195, %223 : vector<1x16x44xf32>
    %cst_141 = arith.constant 5.000000e-01 : f32
    %225 = vector.broadcast %cst_141 : f32 to vector<1x16x44xf32>
    %226 = arith.mulf %225, %224 : vector<1x16x44xf32>
    %227 = math.tanh %226 : vector<1x16x44xf32>
    %cst_142 = arith.constant 5.000000e-01 : f32
    %228 = vector.broadcast %cst_142 : f32 to vector<1x16x44xf32>
    %229 = arith.mulf %228, %227 : vector<1x16x44xf32>
    %cst_143 = arith.constant 5.000000e-01 : f32
    %230 = vector.broadcast %cst_143 : f32 to vector<1x16x44xf32>
    %231 = arith.addf %229, %230 : vector<1x16x44xf32>
    %c0_144 = arith.constant 0 : index
    %c0_145 = arith.constant 0 : index
    %c0_146 = arith.constant 0 : index
    %232 = vector.load %arg3[%c0_144, %c0_145, %c0_146] : memref<1x16x44xf32, #tpu.memory_space<vmem>>, vector<1x16x44xf32>
    tpu.vector_store %arg3[%c0_144, %c0_145, %c0_146], %231 {strides = array<i32>} : memref<1x16x44xf32, #tpu.memory_space<vmem>>, vector<1x16x44xf32>,
    return
  }
  func.func @transform_0(%arg0: i32) -> (i32, i32) {
    %c0_i32 = arith.constant 0 : i32
    %c0_i32_0 = arith.constant 0 : i32
    %c0_i32_1 = arith.constant 0 : i32
    return %c0_i32, %c0_i32_0 : i32, i32
  }
  func.func @transform_1(%arg0: i32) -> (i32, i32, i32) {
    %c0_i32 = arith.constant 0 : i32
    %c0_i32_0 = arith.constant 0 : i32
    %c0_i32_1 = arith.constant 0 : i32
    return %arg0, %c0_i32, %c0_i32_0 : i32, i32, i32
  }
  func.func @transform_2(%arg0: i32) -> (i32, i32, i32) {
    %c0_i32 = arith.constant 0 : i32
    %c0_i32_0 = arith.constant 0 : i32
    %c0_i32_1 = arith.constant 0 : i32
    return %arg0, %c0_i32, %c0_i32_0 : i32, i32, i32
  }
}

</mosaic_0001>

<llo_original>
// kernel: tpu_custom_call.1
$region0: #{tpu_custom_call.1}
  #allocation0 [shape = 'u32[]', space=smem, size = 0x4, offset = 0x4, fixed_abs, tag = 'smem constant byte address 0x4 - core index']
  #allocation1 [shape = 'u32[144,128]{1,0:T(1,128)}', space=vmem, size = 0x12000, scoped, tag = 'internal scratch']
  #allocation2 [shape = 'f32[1,22,50]{2,1,0:T(8,128)}', space=vmem, size = 0x3000, scoped, tag = 'scratch operand']
  %s0 = inlined_call_operand.hbm [shape: f32[7,7], index: 0, kind: input, shape index: {}]
  %s1 = inlined_call_operand.hbm [shape: f32[2,16,16], index: 1, kind: input, shape index: {}]
  %s2 = inlined_call_operand.hbm [shape: f32[1,16,44], index: 2, kind: output, shape index: {}]
  %s3 = sld [smem:[#allocation0]]
  $region26: #{tpu_custom_call.1} parent=0
    _
  %s5 = ssub.s32 1, %s3
  %s6 = scalar_select 0, %s5, %s3
  $region1: #{tpu_custom_call.1} parent=0
    #allocation3 [shape = 'u8[4096]{0}', space=smem, size = 0x1000, scoped, tag = 'input window, operand 0, single buffered']
    #allocation4 [shape = 's32[1]{0}', space=sflag, size = 0x4, scoped, tag = 'scoped memory for tpu_custom_call.1']
    #allocation5 [shape = 's32[1]{0}', space=sflag, size = 0x4, scoped, tag = 'scoped memory for tpu_custom_call.1']
    #allocation6 [shape = 's32[1]{0}', space=sflag, size = 0x4, scoped, tag = 'scoped memory for tpu_custom_call.1']
    #allocation7 [shape = 'u8[16384]{0}', space=vmem, size = 0x4000, scoped, tag = 'input window, operand 1, single buffered']
    #allocation8 [shape = 'u8[8192]{0}', space=vmem, size = 0x2000, scoped, tag = 'output window, operand 0, single buffered']
    %7 = vsyncpa [#allocation6], 0
    %8 = vsyncpa [#allocation4], 0
    %9 = vsyncpa [#allocation5], 0
    // Predicated region
    $region2: #{tpu_custom_call.1} parent=1 // pred_check
      _
    $region3: #{tpu_custom_call.1} parent=1 // pred_check_branch
      %11 = sbr.rel (0) target = $region5
    $region4: #{tpu_custom_call.1} parent=1 // pred_region
      %s13 = ssub.s32 128, 128
      %14 = vsyncadd [#allocation6], %s13
      %17 = dma.hbm_to_smem %s0, 128, [#allocation3], [#allocation6]
    $region5: #{tpu_custom_call.1} parent=1 // pred_fallthru
      _
    // Predicated region
    $region6: #{tpu_custom_call.1} parent=1 // pred_check
      _
    $region7: #{tpu_custom_call.1} parent=1 // pred_check_branch
      %19 = sbr.rel (0) target = $region9
    $region8: #{tpu_custom_call.1} parent=1 // pred_region
      %s21 = ssub.s32 512, 512
      %22 = vsyncadd [#allocation4], %s21
      %s23 = sshll.u32 [#allocation7], 4
      %s24 = int_to_ptr.vmem [resolvable:$true] %s23
      %29 = dma.hbm_to_vmem [thread:$0]  %s1, 512, %s24, [#allocation4], 128, 128, 8
    $region9: #{tpu_custom_call.1} parent=1 // pred_fallthru
      _
    // Predicated region
    $region10: #{tpu_custom_call.1} parent=1 // pred_check
      _
    $region11: #{tpu_custom_call.1} parent=1 // pred_check_branch
      %31 = sbr.rel (0) target = $region13
    $region12: #{tpu_custom_call.1} parent=1 // pred_region
      %32 = dma.done [#allocation6], 128
    $region13: #{tpu_custom_call.1} parent=1 // pred_fallthru
      _
    // Predicated region
    $region14: #{tpu_custom_call.1} parent=1 // pred_check
      _
    $region15: #{tpu_custom_call.1} parent=1 // pred_check_branch
      %34 = sbr.rel (0) target = $region17
    $region16: #{tpu_custom_call.1} parent=1 // pred_region
      %35 = dma.done [#allocation4], 512
    $region17: #{tpu_custom_call.1} parent=1 // pred_fallthru
      _
    %36 = sfence
    %vm37 = vcmask 403456
    %38 = vst.msk [vmem:[#allocation2] sm:$0x7] %vm37, 0.0
    %39 = vst.msk [vmem:[#allocation2 + $0x13] sm:$0x7] %vm37, 0.0
    %vm40 = vcmask 23552
    %41 = vst.msk [vmem:[#allocation2 + $0x3] sm:$0xff] %vm40, 0.0
    %42 = vst.msk [vmem:[#allocation2 + $0xb] sm:$0xff] %vm40, 0.0
    %vm43 = vcmask 203928
    %44 = vst.msk [vmem:[#allocation2 + $0x3] sm:$0xff] %vm43, 0.0
    %45 = vst.msk [vmem:[#allocation2 + $0xb] sm:$0xff] %vm43, 0.0
    %vm46 = vcmask 408904
    %47 = vst.msk [vmem:[#allocation2 + $0x3] sm:$0xff] %vm46, 0.0
    %48 = vst.msk [vmem:[#allocation2 + $0xb] sm:$0xff] %vm46, 0.0
    %v49 = vld [vmem:[#allocation7] sm:$0xff]
    %v50 = vld [vmem:[#allocation7 + $0x8] sm:$0xff]
    %53 = vrot.lane.b32.xlu0 %v49, 3
    %v54 = vpop.permute.xlu0 %53
    %55 = vrot.lane.b32.xlu0 %v50, 3
    %v56 = vpop.permute.xlu0 %55
    %vm59 = vcmask 154648
    %60 = vst.msk [vmem:[#allocation2 + $0x3] sm:$0xff] %vm59, %v54
    %61 = vst.msk [vmem:[#allocation2 + $0xb] sm:$0xff] %vm59, %v56
    %s62 = scalar_lea.vmem [#allocation7], 16
    %v63 = vld [vmem:[%s62] sm:$0xff]
    %v64 = vld [vmem:[%s62 + $0x8] sm:$0xff]
    %67 = vrot.lane.b32.xlu0 %v63, 25
    %v68 = vpop.permute.xlu0 %67
    %69 = vrot.lane.b32.xlu0 %v64, 25
    %v70 = vpop.permute.xlu0 %69
    %vm73 = vcmask 335048
    %74 = vst.msk [vmem:[#allocation2 + $0x3] sm:$0xff] %vm73, %v68
    %75 = vst.msk [vmem:[#allocation2 + $0xb] sm:$0xff] %vm73, %v70
    %v76 = vld [vmem:[#allocation2] sm:$0xff]
    %v77 = vld [vmem:[#allocation2 + $0x8] sm:$0xff]
    %v78 = vld [vmem:[#allocation2 + $0x10] sm:$0x3f]
    %s79 = sld [smem:[#allocation3]]
    %v80 = vstv %s79
    %v81 = vmul.f32 %v76, %v80
    %v82 = vmul.f32 %v77, %v80
    %s83 = sld [smem:[#allocation3 + $0x1]]
    %v84 = vstv %s83
    %v85 = vmul.f32 %v76, %v84
    %v86 = vmul.f32 %v77, %v84
    %89 = vrot.lane.b32.xlu0 %v85, 127
    %v90 = vpop.permute.xlu0 %89
    %91 = vrot.lane.b32.xlu0 %v86, 127
    %v92 = vpop.permute.xlu0 %91
    %v95 = vadd.f32 %v81, %v90
    %v96 = vadd.f32 %v82, %v92
    %s97 = sld [smem:[#allocation3 + $0x2]]
    %v98 = vstv %s97
    %v99 = vmul.f32 %v76, %v98
    %v100 = vmul.f32 %v77, %v98
    %103 = vrot.lane.b32.xlu0 %v99, 126
    %v104 = vpop.permute.xlu0 %103
    %105 = vrot.lane.b32.xlu0 %v100, 126
    %v106 = vpop.permute.xlu0 %105
    %v109 = vadd.f32 %v95, %v104
    %v110 = vadd.f32 %v96, %v106
    %s111 = sld [smem:[#allocation3 + $0x3]]
    %v112 = vstv %s111
    %v113 = vmul.f32 %v76, %v112
    %v114 = vmul.f32 %v77, %v112
    %117 = vrot.lane.b32.xlu0 %v113, 125
    %v118 = vpop.permute.xlu0 %117
    %119 = vrot.lane.b32.xlu0 %v114, 125
    %v120 = vpop.permute.xlu0 %119
    %v123 = vadd.f32 %v109, %v118
    %v124 = vadd.f32 %v110, %v120
    %s125 = sld [smem:[#allocation3 + $0x4]]
    %v126 = vstv %s125
    %v127 = vmul.f32 %v76, %v126
    %v128 = vmul.f32 %v77, %v126
    %131 = vrot.lane.b32.xlu0 %v127, 124
    %v132 = vpop.permute.xlu0 %131
    %133 = vrot.lane.b32.xlu0 %v128, 124
    %v134 = vpop.permute.xlu0 %133
    %v137 = vadd.f32 %v123, %v132
    %v138 = vadd.f32 %v124, %v134
    %s139 = sld [smem:[#allocation3 + $0x5]]
    %v140 = vstv %s139
    %v141 = vmul.f32 %v76, %v140
    %v142 = vmul.f32 %v77, %v140
    %145 = vrot.lane.b32.xlu0 %v141, 123
    %v146 = vpop.permute.xlu0 %145
    %147 = vrot.lane.b32.xlu0 %v142, 123
    %v148 = vpop.permute.xlu0 %147
    %v151 = vadd.f32 %v137, %v146
    %v152 = vadd.f32 %v138, %v148
    %s153 = sld [smem:[#allocation3 + $0x6]]
    %v154 = vstv %s153
    %v155 = vmul.f32 %v76, %v154
    %v156 = vmul.f32 %v77, %v154
    %159 = vrot.lane.b32.xlu0 %v155, 122
    %v160 = vpop.permute.xlu0 %159
    %161 = vrot.lane.b32.xlu0 %v156, 122
    %v162 = vpop.permute.xlu0 %161
    %v165 = vadd.f32 %v151, %v160
    %v166 = vadd.f32 %v152, %v162
    %v167 = vadd.f32 %v165, 0.0
    %v168 = vadd.f32 %v166, 0.0
    %s169 = sld [smem:[#allocation3 + $0x80]]
    %v170 = vstv %s169
    %v171 = vmul.f32 %v76, %v170
    %v172 = vmul.f32 %v77, %v170
    %v173 = vmul.f32 %v78, %v170
    %s174 = sld [smem:[#allocation3 + $0x81]]
    %v175 = vstv %s174
    %v176 = vmul.f32 %v76, %v175
    %v177 = vmul.f32 %v77, %v175
    %v178 = vmul.f32 %v78, %v175
    %182 = vrot.lane.b32.xlu0 %v176, 127
    %v183 = vpop.permute.xlu0 %182
    %184 = vrot.lane.b32.xlu0 %v177, 127
    %v185 = vpop.permute.xlu0 %184
    %186 = vrot.lane.b32.xlu0 %v178, 127
    %v187 = vpop.permute.xlu0 %186
    %v191 = vadd.f32 %v171, %v183
    %v192 = vadd.f32 %v172, %v185
    %v193 = vadd.f32 %v173, %v187
    %s194 = sld [smem:[#allocation3 + $0x82]]
    %v195 = vstv %s194
    %v196 = vmul.f32 %v76, %v195
    %v197 = vmul.f32 %v77, %v195
    %v198 = vmul.f32 %v78, %v195
    %202 = vrot.lane.b32.xlu0 %v196, 126
    %v203 = vpop.permute.xlu0 %202
    %204 = vrot.lane.b32.xlu0 %v197, 126
    %v205 = vpop.permute.xlu0 %204
    %206 = vrot.lane.b32.xlu0 %v198, 126
    %v207 = vpop.permute.xlu0 %206
    %v211 = vadd.f32 %v191, %v203
    %v212 = vadd.f32 %v192, %v205
    %v213 = vadd.f32 %v193, %v207
    %s214 = sld [smem:[#allocation3 + $0x83]]
    %v215 = vstv %s214
    %v216 = vmul.f32 %v76, %v215
    %v217 = vmul.f32 %v77, %v215
    %v218 = vmul.f32 %v78, %v215
    %222 = vrot.lane.b32.xlu0 %v216, 125
    %v223 = vpop.permute.xlu0 %222
    %224 = vrot.lane.b32.xlu0 %v217, 125
    %v225 = vpop.permute.xlu0 %224
    %226 = vrot.lane.b32.xlu0 %v218, 125
    %v227 = vpop.permute.xlu0 %226
    %v231 = vadd.f32 %v211, %v223
    %v232 = vadd.f32 %v212, %v225
    %v233 = vadd.f32 %v213, %v227
    %s234 = sld [smem:[#allocation3 + $0x84]]
    %v235 = vstv %s234
    %v236 = vmul.f32 %v76, %v235
    %v237 = vmul.f32 %v77, %v235
    %v238 = vmul.f32 %v78, %v235
    %242 = vrot.lane.b32.xlu0 %v236, 124
    %v243 = vpop.permute.xlu0 %242
    %244 = vrot.lane.b32.xlu0 %v237, 124
    %v245 = vpop.permute.xlu0 %244
    %246 = vrot.lane.b32.xlu0 %v238, 124
    %v247 = vpop.permute.xlu0 %246
    %v251 = vadd.f32 %v231, %v243
    %v252 = vadd.f32 %v232, %v245
    %v253 = vadd.f32 %v233, %v247
    %s254 = sld [smem:[#allocation3 + $0x85]]
    %v255 = vstv %s254
    %v256 = vmul.f32 %v76, %v255
    %v257 = vmul.f32 %v77, %v255
    %v258 = vmul.f32 %v78, %v255
    %262 = vrot.lane.b32.xlu0 %v256, 123
    %v263 = vpop.permute.xlu0 %262
    %264 = vrot.lane.b32.xlu0 %v257, 123
    %v265 = vpop.permute.xlu0 %264
    %266 = vrot.lane.b32.xlu0 %v258, 123
    %v267 = vpop.permute.xlu0 %266
    %v271 = vadd.f32 %v251, %v263
    %v272 = vadd.f32 %v252, %v265
    %v273 = vadd.f32 %v253, %v267
    %s274 = sld [smem:[#allocation3 + $0x86]]
    %v275 = vstv %s274
    %v276 = vmul.f32 %v76, %v275
    %v277 = vmul.f32 %v77, %v275
    %v278 = vmul.f32 %v78, %v275
    %282 = vrot.lane.b32.xlu0 %v276, 122
    %v283 = vpop.permute.xlu0 %282
    %284 = vrot.lane.b32.xlu0 %v277, 122
    %v285 = vpop.permute.xlu0 %284
    %286 = vrot.lane.b32.xlu0 %v278, 122
    %v287 = vpop.permute.xlu0 %286
    %v291 = vadd.f32 %v271, %v283
    %v292 = vadd.f32 %v272, %v285
    %v293 = vadd.f32 %v273, %v287
    %vm297 = vcmask 1046528
    %v298 = vrot.slane %v291, 1
    %v299 = vrot.slane %v292, 1
    %v300 = vsel %vm297, %v298, %v299
    %v301 = vrot.slane %v293, 1
    %v302 = vsel %vm297, %v299, %v301
    %v305 = vadd.f32 %v167, %v300
    %v306 = vadd.f32 %v168, %v302
    %s307 = sld [smem:[#allocation3 + $0x100]]
    %v308 = vstv %s307
    %v309 = vmul.f32 %v76, %v308
    %v310 = vmul.f32 %v77, %v308
    %v311 = vmul.f32 %v78, %v308
    %s312 = sld [smem:[#allocation3 + $0x101]]
    %v313 = vstv %s312
    %v314 = vmul.f32 %v76, %v313
    %v315 = vmul.f32 %v77, %v313
    %v316 = vmul.f32 %v78, %v313
    %320 = vrot.lane.b32.xlu0 %v314, 127
    %v321 = vpop.permute.xlu0 %320
    %322 = vrot.lane.b32.xlu0 %v315, 127
    %v323 = vpop.permute.xlu0 %322
    %324 = vrot.lane.b32.xlu0 %v316, 127
    %v325 = vpop.permute.xlu0 %324
    %v329 = vadd.f32 %v309, %v321
    %v330 = vadd.f32 %v310, %v323
    %v331 = vadd.f32 %v311, %v325
    %s332 = sld [smem:[#allocation3 + $0x102]]
    %v333 = vstv %s332
    %v334 = vmul.f32 %v76, %v333
    %v335 = vmul.f32 %v77, %v333
    %v336 = vmul.f32 %v78, %v333
    %340 = vrot.lane.b32.xlu0 %v334, 126
    %v341 = vpop.permute.xlu0 %340
    %342 = vrot.lane.b32.xlu0 %v335, 126
    %v343 = vpop.permute.xlu0 %342
    %344 = vrot.lane.b32.xlu0 %v336, 126
    %v345 = vpop.permute.xlu0 %344
    %v349 = vadd.f32 %v329, %v341
    %v350 = vadd.f32 %v330, %v343
    %v351 = vadd.f32 %v331, %v345
    %s352 = sld [smem:[#allocation3 + $0x103]]
    %v353 = vstv %s352
    %v354 = vmul.f32 %v76, %v353
    %v355 = vmul.f32 %v77, %v353
    %v356 = vmul.f32 %v78, %v353
    %360 = vrot.lane.b32.xlu0 %v354, 125
    %v361 = vpop.permute.xlu0 %360
    %362 = vrot.lane.b32.xlu0 %v355, 125
    %v363 = vpop.permute.xlu0 %362
    %364 = vrot.lane.b32.xlu0 %v356, 125
    %v365 = vpop.permute.xlu0 %364
    %v369 = vadd.f32 %v349, %v361
    %v370 = vadd.f32 %v350, %v363
    %v371 = vadd.f32 %v351, %v365
    %s372 = sld [smem:[#allocation3 + $0x104]]
    %v373 = vstv %s372
    %v374 = vmul.f32 %v76, %v373
    %v375 = vmul.f32 %v77, %v373
    %v376 = vmul.f32 %v78, %v373
    %380 = vrot.lane.b32.xlu0 %v374, 124
    %v381 = vpop.permute.xlu0 %380
    %382 = vrot.lane.b32.xlu0 %v375, 124
    %v383 = vpop.permute.xlu0 %382
    %384 = vrot.lane.b32.xlu0 %v376, 124
    %v385 = vpop.permute.xlu0 %384
    %v389 = vadd.f32 %v369, %v381
    %v390 = vadd.f32 %v370, %v383
    %v391 = vadd.f32 %v371, %v385
    %s392 = sld [smem:[#allocation3 + $0x105]]
    %v393 = vstv %s392
    %v394 = vmul.f32 %v76, %v393
    %v395 = vmul.f32 %v77, %v393
    %v396 = vmul.f32 %v78, %v393
    %400 = vrot.lane.b32.xlu0 %v394, 123
    %v401 = vpop.permute.xlu0 %400
    %402 = vrot.lane.b32.xlu0 %v395, 123
    %v403 = vpop.permute.xlu0 %402
    %404 = vrot.lane.b32.xlu0 %v396, 123
    %v405 = vpop.permute.xlu0 %404
    %v409 = vadd.f32 %v389, %v401
    %v410 = vadd.f32 %v390, %v403
    %v411 = vadd.f32 %v391, %v405
    %s412 = sld [smem:[#allocation3 + $0x106]]
    %v413 = vstv %s412
    %v414 = vmul.f32 %v76, %v413
    %v415 = vmul.f32 %v77, %v413
    %v416 = vmul.f32 %v78, %v413
    %420 = vrot.lane.b32.xlu0 %v414, 122
    %v421 = vpop.permute.xlu0 %420
    %422 = vrot.lane.b32.xlu0 %v415, 122
    %v423 = vpop.permute.xlu0 %422
    %424 = vrot.lane.b32.xlu0 %v416, 122
    %v425 = vpop.permute.xlu0 %424
    %v429 = vadd.f32 %v409, %v421
    %v430 = vadd.f32 %v410, %v423
    %v431 = vadd.f32 %v411, %v425
    %vm435 = vcmask 1045504
    %v436 = vrot.slane %v429, 2
    %v437 = vrot.slane %v430, 2
    %v438 = vsel %vm435, %v436, %v437
    %v439 = vrot.slane %v431, 2
    %v440 = vsel %vm435, %v437, %v439
    %v443 = vadd.f32 %v305, %v438
    %v444 = vadd.f32 %v306, %v440
    %s445 = sld [smem:[#allocation3 + $0x180]]
    %v446 = vstv %s445
    %v447 = vmul.f32 %v76, %v446
    %v448 = vmul.f32 %v77, %v446
    %v449 = vmul.f32 %v78, %v446
    %s450 = sld [smem:[#allocation3 + $0x181]]
    %v451 = vstv %s450
    %v452 = vmul.f32 %v76, %v451
    %v453 = vmul.f32 %v77, %v451
    %v454 = vmul.f32 %v78, %v451
    %458 = vrot.lane.b32.xlu0 %v452, 127
    %v459 = vpop.permute.xlu0 %458
    %460 = vrot.lane.b32.xlu0 %v453, 127
    %v461 = vpop.permute.xlu0 %460
    %462 = vrot.lane.b32.xlu0 %v454, 127
    %v463 = vpop.permute.xlu0 %462
    %v467 = vadd.f32 %v447, %v459
    %v468 = vadd.f32 %v448, %v461
    %v469 = vadd.f32 %v449, %v463
    %s470 = sld [smem:[#allocation3 + $0x182]]
    %v471 = vstv %s470
    %v472 = vmul.f32 %v76, %v471
    %v473 = vmul.f32 %v77, %v471
    %v474 = vmul.f32 %v78, %v471
    %478 = vrot.lane.b32.xlu0 %v472, 126
    %v479 = vpop.permute.xlu0 %478
    %480 = vrot.lane.b32.xlu0 %v473, 126
    %v481 = vpop.permute.xlu0 %480
    %482 = vrot.lane.b32.xlu0 %v474, 126
    %v483 = vpop.permute.xlu0 %482
    %v487 = vadd.f32 %v467, %v479
    %v488 = vadd.f32 %v468, %v481
    %v489 = vadd.f32 %v469, %v483
    %s490 = sld [smem:[#allocation3 + $0x183]]
    %v491 = vstv %s490
    %v492 = vmul.f32 %v76, %v491
    %v493 = vmul.f32 %v77, %v491
    %v494 = vmul.f32 %v78, %v491
    %498 = vrot.lane.b32.xlu0 %v492, 125
    %v499 = vpop.permute.xlu0 %498
    %500 = vrot.lane.b32.xlu0 %v493, 125
    %v501 = vpop.permute.xlu0 %500
    %502 = vrot.lane.b32.xlu0 %v494, 125
    %v503 = vpop.permute.xlu0 %502
    %v507 = vadd.f32 %v487, %v499
    %v508 = vadd.f32 %v488, %v501
    %v509 = vadd.f32 %v489, %v503
    %s510 = sld [smem:[#allocation3 + $0x184]]
    %v511 = vstv %s510
    %v512 = vmul.f32 %v76, %v511
    %v513 = vmul.f32 %v77, %v511
    %v514 = vmul.f32 %v78, %v511
    %518 = vrot.lane.b32.xlu0 %v512, 124
    %v519 = vpop.permute.xlu0 %518
    %520 = vrot.lane.b32.xlu0 %v513, 124
    %v521 = vpop.permute.xlu0 %520
    %522 = vrot.lane.b32.xlu0 %v514, 124
    %v523 = vpop.permute.xlu0 %522
    %v527 = vadd.f32 %v507, %v519
    %v528 = vadd.f32 %v508, %v521
    %v529 = vadd.f32 %v509, %v523
    %s530 = sld [smem:[#allocation3 + $0x185]]
    %v531 = vstv %s530
    %v532 = vmul.f32 %v76, %v531
    %v533 = vmul.f32 %v77, %v531
    %v534 = vmul.f32 %v78, %v531
    %538 = vrot.lane.b32.xlu0 %v532, 123
    %v539 = vpop.permute.xlu0 %538
    %540 = vrot.lane.b32.xlu0 %v533, 123
    %v541 = vpop.permute.xlu0 %540
    %542 = vrot.lane.b32.xlu0 %v534, 123
    %v543 = vpop.permute.xlu0 %542
    %v547 = vadd.f32 %v527, %v539
    %v548 = vadd.f32 %v528, %v541
    %v549 = vadd.f32 %v529, %v543
    %s550 = sld [smem:[#allocation3 + $0x186]]
    %v551 = vstv %s550
    %v552 = vmul.f32 %v76, %v551
    %v553 = vmul.f32 %v77, %v551
    %v554 = vmul.f32 %v78, %v551
    %558 = vrot.lane.b32.xlu0 %v552, 122
    %v559 = vpop.permute.xlu0 %558
    %560 = vrot.lane.b32.xlu0 %v553, 122
    %v561 = vpop.permute.xlu0 %560
    %562 = vrot.lane.b32.xlu0 %v554, 122
    %v563 = vpop.permute.xlu0 %562
    %v567 = vadd.f32 %v547, %v559
    %v568 = vadd.f32 %v548, %v561
    %v569 = vadd.f32 %v549, %v563
    %vm573 = vcmask 1044480
    %v574 = vrot.slane %v567, 3
    %v575 = vrot.slane %v568, 3
    %v576 = vsel %vm573, %v574, %v575
    %v577 = vrot.slane %v569, 3
    %v578 = vsel %vm573, %v575, %v577
    %v581 = vadd.f32 %v443, %v576
    %v582 = vadd.f32 %v444, %v578
    %s583 = sld [smem:[#allocation3 + $0x200]]
    %v584 = vstv %s583
    %v585 = vmul.f32 %v76, %v584
    %v586 = vmul.f32 %v77, %v584
    %v587 = vmul.f32 %v78, %v584
    %s588 = sld [smem:[#allocation3 + $0x201]]
    %v589 = vstv %s588
    %v590 = vmul.f32 %v76, %v589
    %v591 = vmul.f32 %v77, %v589
    %v592 = vmul.f32 %v78, %v589
    %596 = vrot.lane.b32.xlu0 %v590, 127
    %v597 = vpop.permute.xlu0 %596
    %598 = vrot.lane.b32.xlu0 %v591, 127
    %v599 = vpop.permute.xlu0 %598
    %600 = vrot.lane.b32.xlu0 %v592, 127
    %v601 = vpop.permute.xlu0 %600
    %v605 = vadd.f32 %v585, %v597
    %v606 = vadd.f32 %v586, %v599
    %v607 = vadd.f32 %v587, %v601
    %s608 = sld [smem:[#allocation3 + $0x202]]
    %v609 = vstv %s608
    %v610 = vmul.f32 %v76, %v609
    %v611 = vmul.f32 %v77, %v609
    %v612 = vmul.f32 %v78, %v609
    %616 = vrot.lane.b32.xlu0 %v610, 126
    %v617 = vpop.permute.xlu0 %616
    %618 = vrot.lane.b32.xlu0 %v611, 126
    %v619 = vpop.permute.xlu0 %618
    %620 = vrot.lane.b32.xlu0 %v612, 126
    %v621 = vpop.permute.xlu0 %620
    %v625 = vadd.f32 %v605, %v617
    %v626 = vadd.f32 %v606, %v619
    %v627 = vadd.f32 %v607, %v621
    %s628 = sld [smem:[#allocation3 + $0x203]]
    %v629 = vstv %s628
    %v630 = vmul.f32 %v76, %v629
    %v631 = vmul.f32 %v77, %v629
    %v632 = vmul.f32 %v78, %v629
    %636 = vrot.lane.b32.xlu0 %v630, 125
    %v637 = vpop.permute.xlu0 %636
    %638 = vrot.lane.b32.xlu0 %v631, 125
    %v639 = vpop.permute.xlu0 %638
    %640 = vrot.lane.b32.xlu0 %v632, 125
    %v641 = vpop.permute.xlu0 %640
    %v645 = vadd.f32 %v625, %v637
    %v646 = vadd.f32 %v626, %v639
    %v647 = vadd.f32 %v627, %v641
    %s648 = sld [smem:[#allocation3 + $0x204]]
    %v649 = vstv %s648
    %v650 = vmul.f32 %v76, %v649
    %v651 = vmul.f32 %v77, %v649
    %v652 = vmul.f32 %v78, %v649
    %656 = vrot.lane.b32.xlu0 %v650, 124
    %v657 = vpop.permute.xlu0 %656
    %658 = vrot.lane.b32.xlu0 %v651, 124
    %v659 = vpop.permute.xlu0 %658
    %660 = vrot.lane.b32.xlu0 %v652, 124
    %v661 = vpop.permute.xlu0 %660
    %v665 = vadd.f32 %v645, %v657
    %v666 = vadd.f32 %v646, %v659
    %v667 = vadd.f32 %v647, %v661
    %s668 = sld [smem:[#allocation3 + $0x205]]
    %v669 = vstv %s668
    %v670 = vmul.f32 %v76, %v669
    %v671 = vmul.f32 %v77, %v669
    %v672 = vmul.f32 %v78, %v669
    %676 = vrot.lane.b32.xlu0 %v670, 123
    %v677 = vpop.permute.xlu0 %676
    %678 = vrot.lane.b32.xlu0 %v671, 123
    %v679 = vpop.permute.xlu0 %678
    %680 = vrot.lane.b32.xlu0 %v672, 123
    %v681 = vpop.permute.xlu0 %680
    %v685 = vadd.f32 %v665, %v677
    %v686 = vadd.f32 %v666, %v679
    %v687 = vadd.f32 %v667, %v681
    %s688 = sld [smem:[#allocation3 + $0x206]]
    %v689 = vstv %s688
    %v690 = vmul.f32 %v76, %v689
    %v691 = vmul.f32 %v77, %v689
    %v692 = vmul.f32 %v78, %v689
    %696 = vrot.lane.b32.xlu0 %v690, 122
    %v697 = vpop.permute.xlu0 %696
    %698 = vrot.lane.b32.xlu0 %v691, 122
    %v699 = vpop.permute.xlu0 %698
    %700 = vrot.lane.b32.xlu0 %v692, 122
    %v701 = vpop.permute.xlu0 %700
    %v705 = vadd.f32 %v685, %v697
    %v706 = vadd.f32 %v686, %v699
    %v707 = vadd.f32 %v687, %v701
    %vm711 = vcmask 1043456
    %v712 = vrot.slane %v705, 4
    %v713 = vrot.slane %v706, 4
    %v714 = vsel %vm711, %v712, %v713
    %v715 = vrot.slane %v707, 4
    %v716 = vsel %vm711, %v713, %v715
    %v719 = vadd.f32 %v581, %v714
    %v720 = vadd.f32 %v582, %v716
    %s721 = sld [smem:[#allocation3 + $0x280]]
    %v722 = vstv %s721
    %v723 = vmul.f32 %v76, %v722
    %v724 = vmul.f32 %v77, %v722
    %v725 = vmul.f32 %v78, %v722
    %s726 = sld [smem:[#allocation3 + $0x281]]
    %v727 = vstv %s726
    %v728 = vmul.f32 %v76, %v727
    %v729 = vmul.f32 %v77, %v727
    %v730 = vmul.f32 %v78, %v727
    %734 = vrot.lane.b32.xlu0 %v728, 127
    %v735 = vpop.permute.xlu0 %734
    %736 = vrot.lane.b32.xlu0 %v729, 127
    %v737 = vpop.permute.xlu0 %736
    %738 = vrot.lane.b32.xlu0 %v730, 127
    %v739 = vpop.permute.xlu0 %738
    %v743 = vadd.f32 %v723, %v735
    %v744 = vadd.f32 %v724, %v737
    %v745 = vadd.f32 %v725, %v739
    %s746 = sld [smem:[#allocation3 + $0x282]]
    %v747 = vstv %s746
    %v748 = vmul.f32 %v76, %v747
    %v749 = vmul.f32 %v77, %v747
    %v750 = vmul.f32 %v78, %v747
    %754 = vrot.lane.b32.xlu0 %v748, 126
    %v755 = vpop.permute.xlu0 %754
    %756 = vrot.lane.b32.xlu0 %v749, 126
    %v757 = vpop.permute.xlu0 %756
    %758 = vrot.lane.b32.xlu0 %v750, 126
    %v759 = vpop.permute.xlu0 %758
    %v763 = vadd.f32 %v743, %v755
    %v764 = vadd.f32 %v744, %v757
    %v765 = vadd.f32 %v745, %v759
    %s766 = sld [smem:[#allocation3 + $0x283]]
    %v767 = vstv %s766
    %v768 = vmul.f32 %v76, %v767
    %v769 = vmul.f32 %v77, %v767
    %v770 = vmul.f32 %v78, %v767
    %774 = vrot.lane.b32.xlu0 %v768, 125
    %v775 = vpop.permute.xlu0 %774
    %776 = vrot.lane.b32.xlu0 %v769, 125
    %v777 = vpop.permute.xlu0 %776
    %778 = vrot.lane.b32.xlu0 %v770, 125
    %v779 = vpop.permute.xlu0 %778
    %v783 = vadd.f32 %v763, %v775
    %v784 = vadd.f32 %v764, %v777
    %v785 = vadd.f32 %v765, %v779
    %s786 = sld [smem:[#allocation3 + $0x284]]
    %v787 = vstv %s786
    %v788 = vmul.f32 %v76, %v787
    %v789 = vmul.f32 %v77, %v787
    %v790 = vmul.f32 %v78, %v787
    %794 = vrot.lane.b32.xlu0 %v788, 124
    %v795 = vpop.permute.xlu0 %794
    %796 = vrot.lane.b32.xlu0 %v789, 124
    %v797 = vpop.permute.xlu0 %796
    %798 = vrot.lane.b32.xlu0 %v790, 124
    %v799 = vpop.permute.xlu0 %798
    %v803 = vadd.f32 %v783, %v795
    %v804 = vadd.f32 %v784, %v797
    %v805 = vadd.f32 %v785, %v799
    %s806 = sld [smem:[#allocation3 + $0x285]]
    %v807 = vstv %s806
    %v808 = vmul.f32 %v76, %v807
    %v809 = vmul.f32 %v77, %v807
    %v810 = vmul.f32 %v78, %v807
    %814 = vrot.lane.b32.xlu0 %v808, 123
    %v815 = vpop.permute.xlu0 %814
    %816 = vrot.lane.b32.xlu0 %v809, 123
    %v817 = vpop.permute.xlu0 %816
    %818 = vrot.lane.b32.xlu0 %v810, 123
    %v819 = vpop.permute.xlu0 %818
    %v823 = vadd.f32 %v803, %v815
    %v824 = vadd.f32 %v804, %v817
    %v825 = vadd.f32 %v805, %v819
    %s826 = sld [smem:[#allocation3 + $0x286]]
    %v827 = vstv %s826
    %v828 = vmul.f32 %v76, %v827
    %v829 = vmul.f32 %v77, %v827
    %v830 = vmul.f32 %v78, %v827
    %834 = vrot.lane.b32.xlu0 %v828, 122
    %v835 = vpop.permute.xlu0 %834
    %836 = vrot.lane.b32.xlu0 %v829, 122
    %v837 = vpop.permute.xlu0 %836
    %838 = vrot.lane.b32.xlu0 %v830, 122
    %v839 = vpop.permute.xlu0 %838
    %v843 = vadd.f32 %v823, %v835
    %v844 = vadd.f32 %v824, %v837
    %v845 = vadd.f32 %v825, %v839
    %vm849 = vcmask 1042432
    %v850 = vrot.slane %v843, 5
    %v851 = vrot.slane %v844, 5
    %v852 = vsel %vm849, %v850, %v851
    %v853 = vrot.slane %v845, 5
    %v854 = vsel %vm849, %v851, %v853
    %v857 = vadd.f32 %v719, %v852
    %v858 = vadd.f32 %v720, %v854
    %s859 = sld [smem:[#allocation3 + $0x300]]
    %v860 = vstv %s859
    %v861 = vmul.f32 %v76, %v860
    %v862 = vmul.f32 %v77, %v860
    %v863 = vmul.f32 %v78, %v860
    %s864 = sld [smem:[#allocation3 + $0x301]]
    %v865 = vstv %s864
    %v866 = vmul.f32 %v76, %v865
    %v867 = vmul.f32 %v77, %v865
    %v868 = vmul.f32 %v78, %v865
    %872 = vrot.lane.b32.xlu0 %v866, 127
    %v873 = vpop.permute.xlu0 %872
    %874 = vrot.lane.b32.xlu0 %v867, 127
    %v875 = vpop.permute.xlu0 %874
    %876 = vrot.lane.b32.xlu0 %v868, 127
    %v877 = vpop.permute.xlu0 %876
    %v881 = vadd.f32 %v861, %v873
    %v882 = vadd.f32 %v862, %v875
    %v883 = vadd.f32 %v863, %v877
    %s884 = sld [smem:[#allocation3 + $0x302]]
    %v885 = vstv %s884
    %v886 = vmul.f32 %v76, %v885
    %v887 = vmul.f32 %v77, %v885
    %v888 = vmul.f32 %v78, %v885
    %892 = vrot.lane.b32.xlu0 %v886, 126
    %v893 = vpop.permute.xlu0 %892
    %894 = vrot.lane.b32.xlu0 %v887, 126
    %v895 = vpop.permute.xlu0 %894
    %896 = vrot.lane.b32.xlu0 %v888, 126
    %v897 = vpop.permute.xlu0 %896
    %v901 = vadd.f32 %v881, %v893
    %v902 = vadd.f32 %v882, %v895
    %v903 = vadd.f32 %v883, %v897
    %s904 = sld [smem:[#allocation3 + $0x303]]
    %v905 = vstv %s904
    %v906 = vmul.f32 %v76, %v905
    %v907 = vmul.f32 %v77, %v905
    %v908 = vmul.f32 %v78, %v905
    %912 = vrot.lane.b32.xlu0 %v906, 125
    %v913 = vpop.permute.xlu0 %912
    %914 = vrot.lane.b32.xlu0 %v907, 125
    %v915 = vpop.permute.xlu0 %914
    %916 = vrot.lane.b32.xlu0 %v908, 125
    %v917 = vpop.permute.xlu0 %916
    %v921 = vadd.f32 %v901, %v913
    %v922 = vadd.f32 %v902, %v915
    %v923 = vadd.f32 %v903, %v917
    %s924 = sld [smem:[#allocation3 + $0x304]]
    %v925 = vstv %s924
    %v926 = vmul.f32 %v76, %v925
    %v927 = vmul.f32 %v77, %v925
    %v928 = vmul.f32 %v78, %v925
    %932 = vrot.lane.b32.xlu0 %v926, 124
    %v933 = vpop.permute.xlu0 %932
    %934 = vrot.lane.b32.xlu0 %v927, 124
    %v935 = vpop.permute.xlu0 %934
    %936 = vrot.lane.b32.xlu0 %v928, 124
    %v937 = vpop.permute.xlu0 %936
    %v941 = vadd.f32 %v921, %v933
    %v942 = vadd.f32 %v922, %v935
    %v943 = vadd.f32 %v923, %v937
    %s944 = sld [smem:[#allocation3 + $0x305]]
    %v945 = vstv %s944
    %v946 = vmul.f32 %v76, %v945
    %v947 = vmul.f32 %v77, %v945
    %v948 = vmul.f32 %v78, %v945
    %952 = vrot.lane.b32.xlu0 %v946, 123
    %v953 = vpop.permute.xlu0 %952
    %954 = vrot.lane.b32.xlu0 %v947, 123
    %v955 = vpop.permute.xlu0 %954
    %956 = vrot.lane.b32.xlu0 %v948, 123
    %v957 = vpop.permute.xlu0 %956
    %v961 = vadd.f32 %v941, %v953
    %v962 = vadd.f32 %v942, %v955
    %v963 = vadd.f32 %v943, %v957
    %s964 = sld [smem:[#allocation3 + $0x306]]
    %v965 = vstv %s964
    %v966 = vmul.f32 %v76, %v965
    %v967 = vmul.f32 %v77, %v965
    %v968 = vmul.f32 %v78, %v965
    %972 = vrot.lane.b32.xlu0 %v966, 122
    %v973 = vpop.permute.xlu0 %972
    %974 = vrot.lane.b32.xlu0 %v967, 122
    %v975 = vpop.permute.xlu0 %974
    %976 = vrot.lane.b32.xlu0 %v968, 122
    %v977 = vpop.permute.xlu0 %976
    %v981 = vadd.f32 %v961, %v973
    %v982 = vadd.f32 %v962, %v975
    %v983 = vadd.f32 %v963, %v977
    %vm987 = vcmask 1041408
    %v988 = vrot.slane %v981, 6
    %v989 = vrot.slane %v982, 6
    %v990 = vsel %vm987, %v988, %v989
    %v991 = vrot.slane %v983, 6
    %v992 = vsel %vm987, %v989, %v991
    %v995 = vadd.f32 %v857, %v990
    %v996 = vadd.f32 %v858, %v992
    %v997 = vmul.f32 %v995, 0.5
    %v998 = vmul.f32 %v996, 0.5
    %v999 = vtanh.pop %v997
    %v1000 = vtanh.pop %v998
    %v1001 = vmul.f32 %v999, 0.5
    %v1002 = vmul.f32 %v1000, 0.5
    %v1003 = vadd.f32 %v1001, 0.5
    %v1004 = vadd.f32 %v1002, 0.5
    %vm1005 = vcmask 359424
    %1006 = vst.msk [vmem:[#allocation8] sm:$0xff] %vm1005, %v1003
    %1007 = vst.msk [vmem:[#allocation8 + $0x8] sm:$0xff] %vm1005, %v1004
    // Predicated region
    $region18: #{tpu_custom_call.1} parent=1 // pred_check
      _
    $region19: #{tpu_custom_call.1} parent=1 // pred_check_branch
      %1009 = sbr.rel (0) target = $region21
    $region20: #{tpu_custom_call.1} parent=1 // pred_region
      %s1011 = ssub.s32 256, 256
      %1012 = vsyncadd [#allocation5], %s1011
      %s1013 = sshll.u32 [#allocation8], 4
      %s1014 = int_to_ptr.vmem [resolvable:$true] %s1013
      %1019 = dma.vmem_to_hbm [thread:$0]  %s1014, 256, %s2, [#allocation5], 128, 128, 8
    $region21: #{tpu_custom_call.1} parent=1 // pred_fallthru
      _
    // Predicated region
    $region22: #{tpu_custom_call.1} parent=1 // pred_check
      _
    $region23: #{tpu_custom_call.1} parent=1 // pred_check_branch
      %1021 = sbr.rel (0) target = $region25
    $region24: #{tpu_custom_call.1} parent=1 // pred_region
      %1022 = dma.done [#allocation5], 256
    $region25: #{tpu_custom_call.1} parent=1 // pred_fallthru
      _
    %1023 = vsyncpa [#allocation4], 1
    %1024 = vsyncpa [#allocation5], 1
    %1025 = vsyncpa [#allocation6], 1

</llo_original>
